<compile_context>
chip_gen: v6e
topology: v6e:2x2x1
jax: 0.10.0
libtpu: 0.0.40
codegen_flags: <defaults>
</compile_context>

<pallas_src>
import jax
import jax.numpy as jnp
from jax.experimental import pallas as pl
from jax.experimental.pallas import tpu as pltpu


def _fused_kernel(x_ref, o_ref):
    # x_ref: (H, W, CB) input slab (channels-last, lane-dense)
    # o_ref: (H-1, W-1, CB) output slab
    x = x_ref[...]
    H = x.shape[0]
    W = x.shape[1]

    # Separable 2x2 average (AvgPool2d(kernel_size=2, stride=1, padding=0)):
    rowsum = x[:, : W - 1, :] + x[:, 1:, :]          # (H, W-1, CB)
    v1 = 0.25 * (rowsum[: H - 1, :, :] + rowsum[1:, :, :])  # (H-1, W-1, CB)

    # v2 == v3 == v1 under the documented reinterpretation.
    v6 = jnp.tanh(v1) + v1 * v1

    # Hoisted cropped input slice, reused once (no duplicate materialization).
    xc = x[: H - 1, : W - 1, :]
    o_ref[...] = xc * v6


def model_forward(x):
    """x: (N, C, H, W) float32 -> (N, C, H-1, W-1) float32."""
    N, C, H, W = x.shape
    NC = N * C

    # Channels-last, lane-dense layout: (H, W, NC) padded to a 128 multiple.
    LANE = 128
    cp = pl.cdiv(NC, LANE) * LANE
    # Block the lane axis in the largest multiple of 128 (<= 1024) dividing cp.
    cb = LANE
    for cand in (1024, 512, 256, 128):
        if cp % cand == 0:
            cb = cand
            break

    xt = jnp.transpose(x.reshape(NC, H, W), (1, 2, 0))        # (H, W, NC)
    if cp != NC:
        xt = jnp.pad(xt, ((0, 0), (0, 0), (0, cp - NC)))      # (H, W, cp)

    grid = (cp // cb,)

    out = pl.pallas_call(
        _fused_kernel,
        out_shape=jax.ShapeDtypeStruct((H - 1, W - 1, cp), x.dtype),
        grid=grid,
        in_specs=[pl.BlockSpec((H, W, cb), lambda i: (0, 0, i))],
        out_specs=pl.BlockSpec((H - 1, W - 1, cb), lambda i: (0, 0, i)),
        compiler_params=pltpu.CompilerParams(
            dimension_semantics=("parallel",),
            vmem_limit_bytes=32 * 1024 * 1024,
        ),
    )(xt)

    # Back to NCHW, dropping the lane padding.
    out = jnp.transpose(out[:, :, :NC], (2, 0, 1))             # (NC, H-1, W-1)
    return out.reshape(N, C, H - 1, W - 1)


def _reference(x):
    # Pure-JAX reference of the same (aligned) semantics, for a sanity check.
    v1 = 0.25 * (
        x[..., :-1, :-1] + x[..., 1:, :-1] + x[..., :-1, 1:] + x[..., 1:, 1:]
    )
    v6 = jnp.tanh(v1) + v1 * v1
    return x[..., :-1, :-1] * v6


if __name__ == "__main__":
    key = jax.random.PRNGKey(0)
    x = jax.random.normal(key, (1, 3, 18, 18), dtype=jnp.float32)

    out = model_forward(x)
    out = jax.block_until_ready(out)

    ref = _reference(x)
    assert out.shape == (1, 3, 17, 17), out.shape
    assert jnp.allclose(out, ref, atol=1e-5, rtol=1e-5)

    print("KERNEL_OK")
</pallas_src>

<mosaic_0001>
module attributes {stable_mosaic.version = 11 : i64} {
  func.func @_fused_kernel(%arg0: i32, %arg1: memref<18x18x128xf32, #tpu.memory_space<vmem>>, %arg2: memref<17x17x128xf32, #tpu.memory_space<vmem>>) attributes {dimension_semantics = [#tpu.dimension_semantics<parallel>], iteration_bounds = array<i64: 1>, scalar_prefetch = 0 : i64, scratch_operands = 0 : i64, tpu.core_type = #tpu.core_type<tc>, window_params = [{transform_indices = @transform_0, window_bounds = array<i64: 18, 18, 128>}, {transform_indices = @transform_1, window_bounds = array<i64: 17, 17, 128>}]} {
    %c0 = arith.constant 0 : index
    %c0_0 = arith.constant 0 : index
    %c0_1 = arith.constant 0 : index
    %0 = vector.load %arg1[%c0, %c0_0, %c0_1] : memref<18x18x128xf32, #tpu.memory_space<vmem>>, vector<18x18x128xf32>
    %1 = vector.extract_strided_slice %0 {offsets = [0, 0, 0], sizes = [18, 17, 128], strides = [1, 1, 1]} : vector<18x18x128xf32> to vector<18x17x128xf32>
    %2 = vector.extract_strided_slice %0 {offsets = [0, 1, 0], sizes = [18, 17, 128], strides = [1, 1, 1]} : vector<18x18x128xf32> to vector<18x17x128xf32>
    %3 = arith.addf %1, %2 : vector<18x17x128xf32>
    %4 = vector.extract_strided_slice %3 {offsets = [0, 0, 0], sizes = [17, 17, 128], strides = [1, 1, 1]} : vector<18x17x128xf32> to vector<17x17x128xf32>
    %5 = vector.extract_strided_slice %3 {offsets = [1, 0, 0], sizes = [17, 17, 128], strides = [1, 1, 1]} : vector<18x17x128xf32> to vector<17x17x128xf32>
    %6 = arith.addf %4, %5 : vector<17x17x128xf32>
    %cst = arith.constant 2.500000e-01 : f32
    %7 = vector.broadcast %cst : f32 to vector<17x17x128xf32>
    %8 = arith.mulf %7, %6 : vector<17x17x128xf32>
    %9 = math.tanh %8 : vector<17x17x128xf32>
    %10 = arith.mulf %8, %8 : vector<17x17x128xf32>
    %11 = arith.addf %9, %10 : vector<17x17x128xf32>
    %12 = vector.extract_strided_slice %0 {offsets = [0, 0, 0], sizes = [17, 17, 128], strides = [1, 1, 1]} : vector<18x18x128xf32> to vector<17x17x128xf32>
    %13 = arith.mulf %12, %11 : vector<17x17x128xf32>
    %c0_2 = arith.constant 0 : index
    %c0_3 = arith.constant 0 : index
    %c0_4 = arith.constant 0 : index
    %14 = vector.load %arg2[%c0_2, %c0_3, %c0_4] : memref<17x17x128xf32, #tpu.memory_space<vmem>>, vector<17x17x128xf32>
    tpu.vector_store %arg2[%c0_2, %c0_3, %c0_4], %13 {strides = array<i32>} : memref<17x17x128xf32, #tpu.memory_space<vmem>>, vector<17x17x128xf32>,
    return
  }
  func.func @transform_0(%arg0: i32) -> (i32, i32, i32) {
    %c0_i32 = arith.constant 0 : i32
    %c0_i32_0 = arith.constant 0 : i32
    %c0_i32_1 = arith.constant 0 : i32
    return %c0_i32, %c0_i32_0, %arg0 : i32, i32, i32
  }
  func.func @transform_1(%arg0: i32) -> (i32, i32, i32) {
    %c0_i32 = arith.constant 0 : i32
    %c0_i32_0 = arith.constant 0 : i32
    %c0_i32_1 = arith.constant 0 : i32
    return %c0_i32, %c0_i32_0, %arg0 : i32, i32, i32
  }
}

</mosaic_0001>

<llo_original>
// kernel: tpu_custom_call.1
$region0: #{tpu_custom_call.1}
  #allocation0 [shape = 'u32[]', space=smem, size = 0x4, offset = 0x4, fixed_abs, tag = 'smem constant byte address 0x4 - core index']
  #allocation1 [shape = 'u32[144,128]{1,0:T(1,128)}', space=vmem, size = 0x12000, scoped, tag = 'internal scratch']
  %s0 = inlined_call_operand.hbm [shape: f32[18,18,128], index: 0, kind: input, shape index: {}]
  %s1 = inlined_call_operand.hbm [shape: f32[17,17,128], index: 1, kind: output, shape index: {}]
  %s2 = sld [smem:[#allocation0]]
  $region18: #{tpu_custom_call.1} parent=0
    _
  %s4 = ssub.s32 1, %s2
  %s5 = scalar_select 0, %s4, %s2
  $region1: #{tpu_custom_call.1} parent=0
    #allocation2 [shape = 'u8[221184]{0}', space=vmem, size = 0x36000, scoped, tag = 'input window, operand 0, single buffered']
    #allocation3 [shape = 's32[1]{0}', space=sflag, size = 0x4, scoped, tag = 'scoped memory for tpu_custom_call.1']
    #allocation4 [shape = 's32[1]{0}', space=sflag, size = 0x4, scoped, tag = 'scoped memory for tpu_custom_call.1']
    #allocation5 [shape = 'u8[208896]{0}', space=vmem, size = 0x33000, scoped, tag = 'output window, operand 0, single buffered']
    %6 = vsyncpa [#allocation3], 0
    %7 = vsyncpa [#allocation4], 0
    // Predicated region
    $region2: #{tpu_custom_call.1} parent=1 // pred_check
      _
    $region3: #{tpu_custom_call.1} parent=1 // pred_check_branch
      %9 = sbr.rel (0) target = $region5
    $region4: #{tpu_custom_call.1} parent=1 // pred_region
      %s11 = ssub.s32 6912, 6912
      %12 = vsyncadd [#allocation3], %s11
      %s13 = sshll.u32 [#allocation2], 4
      %s14 = int_to_ptr.vmem [resolvable:$true] %s13
      %19 = dma.hbm_to_vmem [thread:$0]  %s0, 6912, %s14, [#allocation3], 128, 128, 8
    $region5: #{tpu_custom_call.1} parent=1 // pred_fallthru
      _
    // Predicated region
    $region6: #{tpu_custom_call.1} parent=1 // pred_check
      _
    $region7: #{tpu_custom_call.1} parent=1 // pred_check_branch
      %21 = sbr.rel (0) target = $region9
    $region8: #{tpu_custom_call.1} parent=1 // pred_region
      %22 = dma.done [#allocation3], 6912
    $region9: #{tpu_custom_call.1} parent=1 // pred_fallthru
      _
    %v23 = vld [vmem:[#allocation2] sm:$0xff]
    %v24 = vld [vmem:[#allocation2 + $0x8] sm:$0xff]
    %v25 = vld [vmem:[#allocation2 + $0x10] sm:$0x3]
    %v26 = vld [vmem:[#allocation2 + $0x18] sm:$0xff]
    %v27 = vld [vmem:[#allocation2 + $0x20] sm:$0xff]
    %v28 = vld [vmem:[#allocation2 + $0x28] sm:$0x3]
    %v29 = vld [vmem:[#allocation2 + $0x30] sm:$0xff]
    %v30 = vld [vmem:[#allocation2 + $0x38] sm:$0xff]
    %v31 = vld [vmem:[#allocation2 + $0x40] sm:$0x3]
    %v32 = vld [vmem:[#allocation2 + $0x48] sm:$0xff]
    %v33 = vld [vmem:[#allocation2 + $0x50] sm:$0xff]
    %v34 = vld [vmem:[#allocation2 + $0x58] sm:$0x3]
    %v35 = vld [vmem:[#allocation2 + $0x60] sm:$0xff]
    %v36 = vld [vmem:[#allocation2 + $0x68] sm:$0xff]
    %v37 = vld [vmem:[#allocation2 + $0x70] sm:$0x3]
    %v38 = vld [vmem:[#allocation2 + $0x78] sm:$0xff]
    %v39 = vld [vmem:[#allocation2 + $0x80] sm:$0xff]
    %v40 = vld [vmem:[#allocation2 + $0x88] sm:$0x3]
    %v41 = vld [vmem:[#allocation2 + $0x90] sm:$0xff]
    %v42 = vld [vmem:[#allocation2 + $0x98] sm:$0xff]
    %v43 = vld [vmem:[#allocation2 + $0xa0] sm:$0x3]
    %v44 = vld [vmem:[#allocation2 + $0xa8] sm:$0xff]
    %v45 = vld [vmem:[#allocation2 + $0xb0] sm:$0xff]
    %v46 = vld [vmem:[#allocation2 + $0xb8] sm:$0x3]
    %v47 = vld [vmem:[#allocation2 + $0xc0] sm:$0xff]
    %v48 = vld [vmem:[#allocation2 + $0xc8] sm:$0xff]
    %v49 = vld [vmem:[#allocation2 + $0xd0] sm:$0x3]
    %v50 = vld [vmem:[#allocation2 + $0xd8] sm:$0xff]
    %v51 = vld [vmem:[#allocation2 + $0xe0] sm:$0xff]
    %v52 = vld [vmem:[#allocation2 + $0xe8] sm:$0x3]
    %v53 = vld [vmem:[#allocation2 + $0xf0] sm:$0xff]
    %v54 = vld [vmem:[#allocation2 + $0xf8] sm:$0xff]
    %v55 = vld [vmem:[#allocation2 + $0x100] sm:$0x3]
    %v56 = vld [vmem:[#allocation2 + $0x108] sm:$0xff]
    %v57 = vld [vmem:[#allocation2 + $0x110] sm:$0xff]
    %v58 = vld [vmem:[#allocation2 + $0x118] sm:$0x3]
    %v59 = vld [vmem:[#allocation2 + $0x120] sm:$0xff]
    %v60 = vld [vmem:[#allocation2 + $0x128] sm:$0xff]
    %v61 = vld [vmem:[#allocation2 + $0x130] sm:$0x3]
    %v62 = vld [vmem:[#allocation2 + $0x138] sm:$0xff]
    %v63 = vld [vmem:[#allocation2 + $0x140] sm:$0xff]
    %v64 = vld [vmem:[#allocation2 + $0x148] sm:$0x3]
    %v65 = vld [vmem:[#allocation2 + $0x150] sm:$0xff]
    %v66 = vld [vmem:[#allocation2 + $0x158] sm:$0xff]
    %v67 = vld [vmem:[#allocation2 + $0x160] sm:$0x3]
    %v68 = vld [vmem:[#allocation2 + $0x168] sm:$0xff]
    %v69 = vld [vmem:[#allocation2 + $0x170] sm:$0xff]
    %v70 = vld [vmem:[#allocation2 + $0x178] sm:$0x3]
    %v71 = vld [vmem:[#allocation2 + $0x180] sm:$0xff]
    %v72 = vld [vmem:[#allocation2 + $0x188] sm:$0xff]
    %v73 = vld [vmem:[#allocation2 + $0x190] sm:$0x3]
    %v74 = vld [vmem:[#allocation2 + $0x198] sm:$0xff]
    %v75 = vld [vmem:[#allocation2 + $0x1a0] sm:$0xff]
    %v76 = vld [vmem:[#allocation2 + $0x1a8] sm:$0x3]
    %vm131 = vcmask 1046528
    %v132 = vrot.slane %v23, 1
    %v133 = vrot.slane %v24, 1
    %v134 = vsel %vm131, %v132, %v133
    %v135 = vrot.slane %v25, 1
    %v136 = vsel %vm131, %v133, %v135
    %v137 = vrot.slane %v26, 1
    %v138 = vrot.slane %v27, 1
    %v139 = vsel %vm131, %v137, %v138
    %v140 = vrot.slane %v28, 1
    %v141 = vsel %vm131, %v138, %v140
    %v142 = vrot.slane %v29, 1
    %v143 = vrot.slane %v30, 1
    %v144 = vsel %vm131, %v142, %v143
    %v145 = vrot.slane %v31, 1
    %v146 = vsel %vm131, %v143, %v145
    %v147 = vrot.slane %v32, 1
    %v148 = vrot.slane %v33, 1
    %v149 = vsel %vm131, %v147, %v148
    %v150 = vrot.slane %v34, 1
    %v151 = vsel %vm131, %v148, %v150
    %v152 = vrot.slane %v35, 1
    %v153 = vrot.slane %v36, 1
    %v154 = vsel %vm131, %v152, %v153
    %v155 = vrot.slane %v37, 1
    %v156 = vsel %vm131, %v153, %v155
    %v157 = vrot.slane %v38, 1
    %v158 = vrot.slane %v39, 1
    %v159 = vsel %vm131, %v157, %v158
    %v160 = vrot.slane %v40, 1
    %v161 = vsel %vm131, %v158, %v160
    %v162 = vrot.slane %v41, 1
    %v163 = vrot.slane %v42, 1
    %v164 = vsel %vm131, %v162, %v163
    %v165 = vrot.slane %v43, 1
    %v166 = vsel %vm131, %v163, %v165
    %v167 = vrot.slane %v44, 1
    %v168 = vrot.slane %v45, 1
    %v169 = vsel %vm131, %v167, %v168
    %v170 = vrot.slane %v46, 1
    %v171 = vsel %vm131, %v168, %v170
    %v172 = vrot.slane %v47, 1
    %v173 = vrot.slane %v48, 1
    %v174 = vsel %vm131, %v172, %v173
    %v175 = vrot.slane %v49, 1
    %v176 = vsel %vm131, %v173, %v175
    %v177 = vrot.slane %v50, 1
    %v178 = vrot.slane %v51, 1
    %v179 = vsel %vm131, %v177, %v178
    %v180 = vrot.slane %v52, 1
    %v181 = vsel %vm131, %v178, %v180
    %v182 = vrot.slane %v53, 1
    %v183 = vrot.slane %v54, 1
    %v184 = vsel %vm131, %v182, %v183
    %v185 = vrot.slane %v55, 1
    %v186 = vsel %vm131, %v183, %v185
    %v187 = vrot.slane %v56, 1
    %v188 = vrot.slane %v57, 1
    %v189 = vsel %vm131, %v187, %v188
    %v190 = vrot.slane %v58, 1
    %v191 = vsel %vm131, %v188, %v190
    %v192 = vrot.slane %v59, 1
    %v193 = vrot.slane %v60, 1
    %v194 = vsel %vm131, %v192, %v193
    %v195 = vrot.slane %v61, 1
    %v196 = vsel %vm131, %v193, %v195
    %v197 = vrot.slane %v62, 1
    %v198 = vrot.slane %v63, 1
    %v199 = vsel %vm131, %v197, %v198
    %v200 = vrot.slane %v64, 1
    %v201 = vsel %vm131, %v198, %v200
    %v202 = vrot.slane %v65, 1
    %v203 = vrot.slane %v66, 1
    %v204 = vsel %vm131, %v202, %v203
    %v205 = vrot.slane %v67, 1
    %v206 = vsel %vm131, %v203, %v205
    %v207 = vrot.slane %v68, 1
    %v208 = vrot.slane %v69, 1
    %v209 = vsel %vm131, %v207, %v208
    %v210 = vrot.slane %v70, 1
    %v211 = vsel %vm131, %v208, %v210
    %v212 = vrot.slane %v71, 1
    %v213 = vrot.slane %v72, 1
    %v214 = vsel %vm131, %v212, %v213
    %v215 = vrot.slane %v73, 1
    %v216 = vsel %vm131, %v213, %v215
    %v217 = vrot.slane %v74, 1
    %v218 = vrot.slane %v75, 1
    %v219 = vsel %vm131, %v217, %v218
    %v220 = vrot.slane %v76, 1
    %v221 = vsel %vm131, %v218, %v220
    %v276 = vadd.f32 %v23, %v134
    %v277 = vadd.f32 %v24, %v136
    %v278 = vadd.f32 %v25, %v135
    %v279 = vadd.f32 %v26, %v139
    %v280 = vadd.f32 %v27, %v141
    %v281 = vadd.f32 %v28, %v140
    %v282 = vadd.f32 %v29, %v144
    %v283 = vadd.f32 %v30, %v146
    %v284 = vadd.f32 %v31, %v145
    %v285 = vadd.f32 %v32, %v149
    %v286 = vadd.f32 %v33, %v151
    %v287 = vadd.f32 %v34, %v150
    %v288 = vadd.f32 %v35, %v154
    %v289 = vadd.f32 %v36, %v156
    %v290 = vadd.f32 %v37, %v155
    %v291 = vadd.f32 %v38, %v159
    %v292 = vadd.f32 %v39, %v161
    %v293 = vadd.f32 %v40, %v160
    %v294 = vadd.f32 %v41, %v164
    %v295 = vadd.f32 %v42, %v166
    %v296 = vadd.f32 %v43, %v165
    %v297 = vadd.f32 %v44, %v169
    %v298 = vadd.f32 %v45, %v171
    %v299 = vadd.f32 %v46, %v170
    %v300 = vadd.f32 %v47, %v174
    %v301 = vadd.f32 %v48, %v176
    %v302 = vadd.f32 %v49, %v175
    %v303 = vadd.f32 %v50, %v179
    %v304 = vadd.f32 %v51, %v181
    %v305 = vadd.f32 %v52, %v180
    %v306 = vadd.f32 %v53, %v184
    %v307 = vadd.f32 %v54, %v186
    %v308 = vadd.f32 %v55, %v185
    %v309 = vadd.f32 %v56, %v189
    %v310 = vadd.f32 %v57, %v191
    %v311 = vadd.f32 %v58, %v190
    %v312 = vadd.f32 %v59, %v194
    %v313 = vadd.f32 %v60, %v196
    %v314 = vadd.f32 %v61, %v195
    %v315 = vadd.f32 %v62, %v199
    %v316 = vadd.f32 %v63, %v201
    %v317 = vadd.f32 %v64, %v200
    %v318 = vadd.f32 %v65, %v204
    %v319 = vadd.f32 %v66, %v206
    %v320 = vadd.f32 %v67, %v205
    %v321 = vadd.f32 %v68, %v209
    %v322 = vadd.f32 %v69, %v211
    %v323 = vadd.f32 %v70, %v210
    %v324 = vadd.f32 %v71, %v214
    %v325 = vadd.f32 %v72, %v216
    %v326 = vadd.f32 %v73, %v215
    %v327 = vadd.f32 %v74, %v219
    %v328 = vadd.f32 %v75, %v221
    %v329 = vadd.f32 %v76, %v220
    %v330 = vadd.f32 %v276, %v279
    %v331 = vadd.f32 %v277, %v280
    %v332 = vadd.f32 %v278, %v281
    %v333 = vadd.f32 %v279, %v282
    %v334 = vadd.f32 %v280, %v283
    %v335 = vadd.f32 %v281, %v284
    %v336 = vadd.f32 %v282, %v285
    %v337 = vadd.f32 %v283, %v286
    %v338 = vadd.f32 %v284, %v287
    %v339 = vadd.f32 %v285, %v288
    %v340 = vadd.f32 %v286, %v289
    %v341 = vadd.f32 %v287, %v290
    %v342 = vadd.f32 %v288, %v291
    %v343 = vadd.f32 %v289, %v292
    %v344 = vadd.f32 %v290, %v293
    %v345 = vadd.f32 %v291, %v294
    %v346 = vadd.f32 %v292, %v295
    %v347 = vadd.f32 %v293, %v296
    %v348 = vadd.f32 %v294, %v297
    %v349 = vadd.f32 %v295, %v298
    %v350 = vadd.f32 %v296, %v299
    %v351 = vadd.f32 %v297, %v300
    %v352 = vadd.f32 %v298, %v301
    %v353 = vadd.f32 %v299, %v302
    %v354 = vadd.f32 %v300, %v303
    %v355 = vadd.f32 %v301, %v304
    %v356 = vadd.f32 %v302, %v305
    %v357 = vadd.f32 %v303, %v306
    %v358 = vadd.f32 %v304, %v307
    %v359 = vadd.f32 %v305, %v308
    %v360 = vadd.f32 %v306, %v309
    %v361 = vadd.f32 %v307, %v310
    %v362 = vadd.f32 %v308, %v311
    %v363 = vadd.f32 %v309, %v312
    %v364 = vadd.f32 %v310, %v313
    %v365 = vadd.f32 %v311, %v314
    %v366 = vadd.f32 %v312, %v315
    %v367 = vadd.f32 %v313, %v316
    %v368 = vadd.f32 %v314, %v317
    %v369 = vadd.f32 %v315, %v318
    %v370 = vadd.f32 %v316, %v319
    %v371 = vadd.f32 %v317, %v320
    %v372 = vadd.f32 %v318, %v321
    %v373 = vadd.f32 %v319, %v322
    %v374 = vadd.f32 %v320, %v323
    %v375 = vadd.f32 %v321, %v324
    %v376 = vadd.f32 %v322, %v325
    %v377 = vadd.f32 %v323, %v326
    %v378 = vadd.f32 %v324, %v327
    %v379 = vadd.f32 %v325, %v328
    %v380 = vadd.f32 %v326, %v329
    %v381 = vmul.f32 %v330, 0.25
    %v382 = vmul.f32 %v331, 0.25
    %v383 = vmul.f32 %v332, 0.25
    %v384 = vmul.f32 %v333, 0.25
    %v385 = vmul.f32 %v334, 0.25
    %v386 = vmul.f32 %v335, 0.25
    %v387 = vmul.f32 %v336, 0.25
    %v388 = vmul.f32 %v337, 0.25
    %v389 = vmul.f32 %v338, 0.25
    %v390 = vmul.f32 %v339, 0.25
    %v391 = vmul.f32 %v340, 0.25
    %v392 = vmul.f32 %v341, 0.25
    %v393 = vmul.f32 %v342, 0.25
    %v394 = vmul.f32 %v343, 0.25
    %v395 = vmul.f32 %v344, 0.25
    %v396 = vmul.f32 %v345, 0.25
    %v397 = vmul.f32 %v346, 0.25
    %v398 = vmul.f32 %v347, 0.25
    %v399 = vmul.f32 %v348, 0.25
    %v400 = vmul.f32 %v349, 0.25
    %v401 = vmul.f32 %v350, 0.25
    %v402 = vmul.f32 %v351, 0.25
    %v403 = vmul.f32 %v352, 0.25
    %v404 = vmul.f32 %v353, 0.25
    %v405 = vmul.f32 %v354, 0.25
    %v406 = vmul.f32 %v355, 0.25
    %v407 = vmul.f32 %v356, 0.25
    %v408 = vmul.f32 %v357, 0.25
    %v409 = vmul.f32 %v358, 0.25
    %v410 = vmul.f32 %v359, 0.25
    %v411 = vmul.f32 %v360, 0.25
    %v412 = vmul.f32 %v361, 0.25
    %v413 = vmul.f32 %v362, 0.25
    %v414 = vmul.f32 %v363, 0.25
    %v415 = vmul.f32 %v364, 0.25
    %v416 = vmul.f32 %v365, 0.25
    %v417 = vmul.f32 %v366, 0.25
    %v418 = vmul.f32 %v367, 0.25
    %v419 = vmul.f32 %v368, 0.25
    %v420 = vmul.f32 %v369, 0.25
    %v421 = vmul.f32 %v370, 0.25
    %v422 = vmul.f32 %v371, 0.25
    %v423 = vmul.f32 %v372, 0.25
    %v424 = vmul.f32 %v373, 0.25
    %v425 = vmul.f32 %v374, 0.25
    %v426 = vmul.f32 %v375, 0.25
    %v427 = vmul.f32 %v376, 0.25
    %v428 = vmul.f32 %v377, 0.25
    %v429 = vmul.f32 %v378, 0.25
    %v430 = vmul.f32 %v379, 0.25
    %v431 = vmul.f32 %v380, 0.25
    %v432 = vtanh.pop %v381
    %v433 = vtanh.pop %v382
    %v434 = vtanh.pop %v383
    %v435 = vtanh.pop %v384
    %v436 = vtanh.pop %v385
    %v437 = vtanh.pop %v386
    %v438 = vtanh.pop %v387
    %v439 = vtanh.pop %v388
    %v440 = vtanh.pop %v389
    %v441 = vtanh.pop %v390
    %v442 = vtanh.pop %v391
    %v443 = vtanh.pop %v392
    %v444 = vtanh.pop %v393
    %v445 = vtanh.pop %v394
    %v446 = vtanh.pop %v395
    %v447 = vtanh.pop %v396
    %v448 = vtanh.pop %v397
    %v449 = vtanh.pop %v398
    %v450 = vtanh.pop %v399
    %v451 = vtanh.pop %v400
    %v452 = vtanh.pop %v401
    %v453 = vtanh.pop %v402
    %v454 = vtanh.pop %v403
    %v455 = vtanh.pop %v404
    %v456 = vtanh.pop %v405
    %v457 = vtanh.pop %v406
    %v458 = vtanh.pop %v407
    %v459 = vtanh.pop %v408
    %v460 = vtanh.pop %v409
    %v461 = vtanh.pop %v410
    %v462 = vtanh.pop %v411
    %v463 = vtanh.pop %v412
    %v464 = vtanh.pop %v413
    %v465 = vtanh.pop %v414
    %v466 = vtanh.pop %v415
    %v467 = vtanh.pop %v416
    %v468 = vtanh.pop %v417
    %v469 = vtanh.pop %v418
    %v470 = vtanh.pop %v419
    %v471 = vtanh.pop %v420
    %v472 = vtanh.pop %v421
    %v473 = vtanh.pop %v422
    %v474 = vtanh.pop %v423
    %v475 = vtanh.pop %v424
    %v476 = vtanh.pop %v425
    %v477 = vtanh.pop %v426
    %v478 = vtanh.pop %v427
    %v479 = vtanh.pop %v428
    %v480 = vtanh.pop %v429
    %v481 = vtanh.pop %v430
    %v482 = vtanh.pop %v431
    %v483 = vmul.f32 %v381, %v381
    %v484 = vmul.f32 %v382, %v382
    %v485 = vmul.f32 %v383, %v383
    %v486 = vmul.f32 %v384, %v384
    %v487 = vmul.f32 %v385, %v385
    %v488 = vmul.f32 %v386, %v386
    %v489 = vmul.f32 %v387, %v387
    %v490 = vmul.f32 %v388, %v388
    %v491 = vmul.f32 %v389, %v389
    %v492 = vmul.f32 %v390, %v390
    %v493 = vmul.f32 %v391, %v391
    %v494 = vmul.f32 %v392, %v392
    %v495 = vmul.f32 %v393, %v393
    %v496 = vmul.f32 %v394, %v394
    %v497 = vmul.f32 %v395, %v395
    %v498 = vmul.f32 %v396, %v396
    %v499 = vmul.f32 %v397, %v397
    %v500 = vmul.f32 %v398, %v398
    %v501 = vmul.f32 %v399, %v399
    %v502 = vmul.f32 %v400, %v400
    %v503 = vmul.f32 %v401, %v401
    %v504 = vmul.f32 %v402, %v402
    %v505 = vmul.f32 %v403, %v403
    %v506 = vmul.f32 %v404, %v404
    %v507 = vmul.f32 %v405, %v405
    %v508 = vmul.f32 %v406, %v406
    %v509 = vmul.f32 %v407, %v407
    %v510 = vmul.f32 %v408, %v408
    %v511 = vmul.f32 %v409, %v409
    %v512 = vmul.f32 %v410, %v410
    %v513 = vmul.f32 %v411, %v411
    %v514 = vmul.f32 %v412, %v412
    %v515 = vmul.f32 %v413, %v413
    %v516 = vmul.f32 %v414, %v414
    %v517 = vmul.f32 %v415, %v415
    %v518 = vmul.f32 %v416, %v416
    %v519 = vmul.f32 %v417, %v417
    %v520 = vmul.f32 %v418, %v418
    %v521 = vmul.f32 %v419, %v419
    %v522 = vmul.f32 %v420, %v420
    %v523 = vmul.f32 %v421, %v421
    %v524 = vmul.f32 %v422, %v422
    %v525 = vmul.f32 %v423, %v423
    %v526 = vmul.f32 %v424, %v424
    %v527 = vmul.f32 %v425, %v425
    %v528 = vmul.f32 %v426, %v426
    %v529 = vmul.f32 %v427, %v427
    %v530 = vmul.f32 %v428, %v428
    %v531 = vmul.f32 %v429, %v429
    %v532 = vmul.f32 %v430, %v430
    %v533 = vmul.f32 %v431, %v431
    %v534 = vadd.f32 %v432, %v483
    %v535 = vadd.f32 %v433, %v484
    %v536 = vadd.f32 %v434, %v485
    %v537 = vadd.f32 %v435, %v486
    %v538 = vadd.f32 %v436, %v487
    %v539 = vadd.f32 %v437, %v488
    %v540 = vadd.f32 %v438, %v489
    %v541 = vadd.f32 %v439, %v490
    %v542 = vadd.f32 %v440, %v491
    %v543 = vadd.f32 %v441, %v492
    %v544 = vadd.f32 %v442, %v493
    %v545 = vadd.f32 %v443, %v494
    %v546 = vadd.f32 %v444, %v495
    %v547 = vadd.f32 %v445, %v496
    %v548 = vadd.f32 %v446, %v497
    %v549 = vadd.f32 %v447, %v498
    %v550 = vadd.f32 %v448, %v499
    %v551 = vadd.f32 %v449, %v500
    %v552 = vadd.f32 %v450, %v501
    %v553 = vadd.f32 %v451, %v502
    %v554 = vadd.f32 %v452, %v503
    %v555 = vadd.f32 %v453, %v504
    %v556 = vadd.f32 %v454, %v505
    %v557 = vadd.f32 %v455, %v506
    %v558 = vadd.f32 %v456, %v507
    %v559 = vadd.f32 %v457, %v508
    %v560 = vadd.f32 %v458, %v509
    %v561 = vadd.f32 %v459, %v510
    %v562 = vadd.f32 %v460, %v511
    %v563 = vadd.f32 %v461, %v512
    %v564 = vadd.f32 %v462, %v513
    %v565 = vadd.f32 %v463, %v514
    %v566 = vadd.f32 %v464, %v515
    %v567 = vadd.f32 %v465, %v516
    %v568 = vadd.f32 %v466, %v517
    %v569 = vadd.f32 %v467, %v518
    %v570 = vadd.f32 %v468, %v519
    %v571 = vadd.f32 %v469, %v520
    %v572 = vadd.f32 %v470, %v521
    %v573 = vadd.f32 %v471, %v522
    %v574 = vadd.f32 %v472, %v523
    %v575 = vadd.f32 %v473, %v524
    %v576 = vadd.f32 %v474, %v525
    %v577 = vadd.f32 %v475, %v526
    %v578 = vadd.f32 %v476, %v527
    %v579 = vadd.f32 %v477, %v528
    %v580 = vadd.f32 %v478, %v529
    %v581 = vadd.f32 %v479, %v530
    %v582 = vadd.f32 %v480, %v531
    %v583 = vadd.f32 %v481, %v532
    %v584 = vadd.f32 %v482, %v533
    %v585 = vmul.f32 %v23, %v534
    %v586 = vmul.f32 %v24, %v535
    %v587 = vmul.f32 %v25, %v536
    %v588 = vmul.f32 %v26, %v537
    %v589 = vmul.f32 %v27, %v538
    %v590 = vmul.f32 %v28, %v539
    %v591 = vmul.f32 %v29, %v540
    %v592 = vmul.f32 %v30, %v541
    %v593 = vmul.f32 %v31, %v542
    %v594 = vmul.f32 %v32, %v543
    %v595 = vmul.f32 %v33, %v544
    %v596 = vmul.f32 %v34, %v545
    %v597 = vmul.f32 %v35, %v546
    %v598 = vmul.f32 %v36, %v547
    %v599 = vmul.f32 %v37, %v548
    %v600 = vmul.f32 %v38, %v549
    %v601 = vmul.f32 %v39, %v550
    %v602 = vmul.f32 %v40, %v551
    %v603 = vmul.f32 %v41, %v552
    %v604 = vmul.f32 %v42, %v553
    %v605 = vmul.f32 %v43, %v554
    %v606 = vmul.f32 %v44, %v555
    %v607 = vmul.f32 %v45, %v556
    %v608 = vmul.f32 %v46, %v557
    %v609 = vmul.f32 %v47, %v558
    %v610 = vmul.f32 %v48, %v559
    %v611 = vmul.f32 %v49, %v560
    %v612 = vmul.f32 %v50, %v561
    %v613 = vmul.f32 %v51, %v562
    %v614 = vmul.f32 %v52, %v563
    %v615 = vmul.f32 %v53, %v564
    %v616 = vmul.f32 %v54, %v565
    %v617 = vmul.f32 %v55, %v566
    %v618 = vmul.f32 %v56, %v567
    %v619 = vmul.f32 %v57, %v568
    %v620 = vmul.f32 %v58, %v569
    %v621 = vmul.f32 %v59, %v570
    %v622 = vmul.f32 %v60, %v571
    %v623 = vmul.f32 %v61, %v572
    %v624 = vmul.f32 %v62, %v573
    %v625 = vmul.f32 %v63, %v574
    %v626 = vmul.f32 %v64, %v575
    %v627 = vmul.f32 %v65, %v576
    %v628 = vmul.f32 %v66, %v577
    %v629 = vmul.f32 %v67, %v578
    %v630 = vmul.f32 %v68, %v579
    %v631 = vmul.f32 %v69, %v580
    %v632 = vmul.f32 %v70, %v581
    %v633 = vmul.f32 %v71, %v582
    %v634 = vmul.f32 %v72, %v583
    %v635 = vmul.f32 %v73, %v584
    %636 = vst [vmem:[#allocation5] sm:$0xff] %v585
    %637 = vst [vmem:[#allocation5 + $0x8] sm:$0xff] %v586
    %638 = vst [vmem:[#allocation5 + $0x10] sm:$0x1] %v587
    %639 = vst [vmem:[#allocation5 + $0x18] sm:$0xff] %v588
    %640 = vst [vmem:[#allocation5 + $0x20] sm:$0xff] %v589
    %641 = vst [vmem:[#allocation5 + $0x28] sm:$0x1] %v590
    %642 = vst [vmem:[#allocation5 + $0x30] sm:$0xff] %v591
    %643 = vst [vmem:[#allocation5 + $0x38] sm:$0xff] %v592
    %644 = vst [vmem:[#allocation5 + $0x40] sm:$0x1] %v593
    %645 = vst [vmem:[#allocation5 + $0x48] sm:$0xff] %v594
    %646 = vst [vmem:[#allocation5 + $0x50] sm:$0xff] %v595
    %647 = vst [vmem:[#allocation5 + $0x58] sm:$0x1] %v596
    %648 = vst [vmem:[#allocation5 + $0x60] sm:$0xff] %v597
    %649 = vst [vmem:[#allocation5 + $0x68] sm:$0xff] %v598
    %650 = vst [vmem:[#allocation5 + $0x70] sm:$0x1] %v599
    %651 = vst [vmem:[#allocation5 + $0x78] sm:$0xff] %v600
    %652 = vst [vmem:[#allocation5 + $0x80] sm:$0xff] %v601
    %653 = vst [vmem:[#allocation5 + $0x88] sm:$0x1] %v602
    %654 = vst [vmem:[#allocation5 + $0x90] sm:$0xff] %v603
    %655 = vst [vmem:[#allocation5 + $0x98] sm:$0xff] %v604
    %656 = vst [vmem:[#allocation5 + $0xa0] sm:$0x1] %v605
    %657 = vst [vmem:[#allocation5 + $0xa8] sm:$0xff] %v606
    %658 = vst [vmem:[#allocation5 + $0xb0] sm:$0xff] %v607
    %659 = vst [vmem:[#allocation5 + $0xb8] sm:$0x1] %v608
    %660 = vst [vmem:[#allocation5 + $0xc0] sm:$0xff] %v609
    %661 = vst [vmem:[#allocation5 + $0xc8] sm:$0xff] %v610
    %662 = vst [vmem:[#allocation5 + $0xd0] sm:$0x1] %v611
    %663 = vst [vmem:[#allocation5 + $0xd8] sm:$0xff] %v612
    %664 = vst [vmem:[#allocation5 + $0xe0] sm:$0xff] %v613
    %665 = vst [vmem:[#allocation5 + $0xe8] sm:$0x1] %v614
    %666 = vst [vmem:[#allocation5 + $0xf0] sm:$0xff] %v615
    %667 = vst [vmem:[#allocation5 + $0xf8] sm:$0xff] %v616
    %668 = vst [vmem:[#allocation5 + $0x100] sm:$0x1] %v617
    %669 = vst [vmem:[#allocation5 + $0x108] sm:$0xff] %v618
    %670 = vst [vmem:[#allocation5 + $0x110] sm:$0xff] %v619
    %671 = vst [vmem:[#allocation5 + $0x118] sm:$0x1] %v620
    %672 = vst [vmem:[#allocation5 + $0x120] sm:$0xff] %v621
    %673 = vst [vmem:[#allocation5 + $0x128] sm:$0xff] %v622
    %674 = vst [vmem:[#allocation5 + $0x130] sm:$0x1] %v623
    %675 = vst [vmem:[#allocation5 + $0x138] sm:$0xff] %v624
    %676 = vst [vmem:[#allocation5 + $0x140] sm:$0xff] %v625
    %677 = vst [vmem:[#allocation5 + $0x148] sm:$0x1] %v626
    %678 = vst [vmem:[#allocation5 + $0x150] sm:$0xff] %v627
    %679 = vst [vmem:[#allocation5 + $0x158] sm:$0xff] %v628
    %680 = vst [vmem:[#allocation5 + $0x160] sm:$0x1] %v629
    %681 = vst [vmem:[#allocation5 + $0x168] sm:$0xff] %v630
    %682 = vst [vmem:[#allocation5 + $0x170] sm:$0xff] %v631
    %683 = vst [vmem:[#allocation5 + $0x178] sm:$0x1] %v632
    %684 = vst [vmem:[#allocation5 + $0x180] sm:$0xff] %v633
    %685 = vst [vmem:[#allocation5 + $0x188] sm:$0xff] %v634
    %686 = vst [vmem:[#allocation5 + $0x190] sm:$0x1] %v635
    // Predicated region
    $region10: #{tpu_custom_call.1} parent=1 // pred_check
      _
    $region11: #{tpu_custom_call.1} parent=1 // pred_check_branch
      %688 = sbr.rel (0) target = $region13
    $region12: #{tpu_custom_call.1} parent=1 // pred_region
      %s690 = ssub.s32 6528, 6528
      %691 = vsyncadd [#allocation4], %s690
      %s692 = sshll.u32 [#allocation5], 4
      %s693 = int_to_ptr.vmem [resolvable:$true] %s692
      %698 = dma.vmem_to_hbm [thread:$0]  %s693, 6528, %s1, [#allocation4], 128, 128, 8
    $region13: #{tpu_custom_call.1} parent=1 // pred_fallthru
      _
    // Predicated region
    $region14: #{tpu_custom_call.1} parent=1 // pred_check
      _
    $region15: #{tpu_custom_call.1} parent=1 // pred_check_branch
      %700 = sbr.rel (0) target = $region17
    $region16: #{tpu_custom_call.1} parent=1 // pred_region
      %701 = dma.done [#allocation4], 6528
    $region17: #{tpu_custom_call.1} parent=1 // pred_fallthru
      _
    %702 = vsyncpa [#allocation3], 1
    %703 = vsyncpa [#allocation4], 1

</llo_original>
